<compile_context>
chip_gen: v7x
topology: tpu7x:2x2x1
jax: 0.10.0
libtpu: 0.0.40
codegen_flags: <defaults>
</compile_context>

<pallas_src>
import jax
import jax.numpy as jnp
from jax.experimental import pallas as pl
from jax.experimental.pallas import tpu as pltpu

IMAGENET_MEAN = (0.485, 0.456, 0.406)
IMAGENET_STD = (0.229, 0.224, 0.225)


# ------------------------------ fused kernel --------------------------------
def _fused_kernel(scale_ref, shift_ref, x_ref, gam_ref, w_ref, b_ref,
                  xn_ref, out_ref):
    # scale_ref/shift_ref: (C,) f32 SMEM scalars (1/std, -mean/std).
    # x_ref/xn_ref: (BB, C*HW) f32 VMEM (lane-dense, HW a multiple of 128).
    # gam_ref: (BB, C); w_ref: (C, Npad); b_ref: (1, Npad); out_ref: (BB, Npad).
    C = gam_ref.shape[1]
    HW = x_ref.shape[1] // C
    inv_hw = 1.0 / HW

    logits = b_ref[...]                                    # (1, Npad), broadcasts up
    for c in range(C):                                     # static unroll, 3 channels
        sc = scale_ref[c]                                  # SMEM scalar reads hoisted
        sh = shift_ref[c]
        sl = slice(c * HW, (c + 1) * HW)                   # 128-aligned lane slab (view)
        # Fused multiply-add normalization: (x - mean)/std == x*scale + shift.
        xn_c = x_ref[:, sl] * sc + sh                      # (BB, HW) VPU FMA
        xn_ref[:, sl] = xn_c                               # unmasked lane-dense store
        # Global average pool: lane-axis reduction (XLU) while data is in vregs.
        gap_c = jnp.sum(xn_c, axis=-1, keepdims=True) * inv_hw   # (BB, 1)
        feat_c = gap_c * gam_ref[:, c:(c + 1)]                   # gamma modulation
        # Head as VPU broadcast multiply-add (K=3 is far too small for the MXU).
        logits = logits + feat_c * w_ref[c:(c + 1), :]           # (BB, Npad)
    out_ref[...] = logits


# ------------------------------ batch blocking -------------------------------
def _pick_batch_block(batch, bytes_per_image,
                      target_bytes=3 * 1024 * 1024,
                      max_bytes=6 * 1024 * 1024):
    """Pick the batch block size.

    Constraints: the block must divide `batch` and be a multiple of 8 (sublane
    tiling of the second-to-last block dim) or equal the full batch.
    Preference: input block around 2-4 MiB (measured near-roofline DMA tiles)
    which also yields >=2 grid steps on real batches so loads/stores pipeline;
    hard cap keeps in+out double-buffered blocks far below the 32 MiB scoped
    VMEM limit.
    """
    if batch * bytes_per_image <= target_bytes:
        return batch                                       # tiny problem: one step
    cands = [c for c in range(8, batch, 8) if batch % c == 0]
    under_target = [c for c in cands if c * bytes_per_image <= target_bytes]
    if under_target:
        return max(under_target)
    under_max = [c for c in cands if c * bytes_per_image <= max_bytes]
    if under_max:
        return min(under_max)
    if batch * bytes_per_image <= max_bytes:
        return batch
    return min(cands) if cands else batch


# ------------------------------ public wrapper -------------------------------
def gamma_wrap_for_densenet_forward(x, gammas, w, b, mean, std):
    """Returns (normalized_x, logits) for the fused forward pass."""
    B, C, H, W = x.shape
    HW = H * W
    N = w.shape[1]
    n_pad = ((N + 127) // 128) * 128

    # Per-channel lane slabs must be 128-aligned for unmasked stores & correct GAP.
    # Holds for ImageNet (224*224 = 392*128) and the demo (16*16 = 2*128).
    assert HW % 128 == 0, "H*W must be a multiple of 128 (e.g. 224x224, 16x16)"

    # Lane-dense flattening + precomputed FMA coefficients (wrapper-side, cheap).
    x_flat = x.reshape(B, C * HW).astype(jnp.float32)
    scale = (1.0 / std).astype(jnp.float32)                # (C,)
    shift = (-mean / std).astype(jnp.float32)              # (C,)
    w_pad = jnp.zeros((C, n_pad), jnp.float32).at[:, :N].set(w)
    b_pad = jnp.zeros((1, n_pad), jnp.float32).at[:, :N].set(b.reshape(1, N))

    bytes_per_image = C * HW * 4
    bb = _pick_batch_block(B, bytes_per_image)
    grid = (B // bb,)

    # Memory-bound cost: read x once, write xn once (+ tiny head traffic).
    cost = pl.CostEstimate(
        flops=2 * B * C * HW + 4 * B * C * n_pad,
        transcendentals=0,
        bytes_accessed=2 * B * C * HW * 4 + B * n_pad * 4,
    )

    xn_flat, logits_pad = pl.pallas_call(
        _fused_kernel,
        out_shape=(
            jax.ShapeDtypeStruct((B, C * HW), jnp.float32),   # normalized input
            jax.ShapeDtypeStruct((B, n_pad), jnp.float32),    # head logits (padded)
        ),
        grid=grid,
        in_specs=[
            pl.BlockSpec(memory_space=pltpu.SMEM),             # scale (C,)
            pl.BlockSpec(memory_space=pltpu.SMEM),             # shift (C,)
            pl.BlockSpec((bb, C * HW), lambda i: (i, 0)),      # x block
            pl.BlockSpec((bb, C), lambda i: (i, 0)),           # gammas block
            pl.BlockSpec((C, n_pad), lambda i: (0, 0)),        # head weight
            pl.BlockSpec((1, n_pad), lambda i: (0, 0)),        # head bias
        ],
        out_specs=(
            pl.BlockSpec((bb, C * HW), lambda i: (i, 0)),
            pl.BlockSpec((bb, n_pad), lambda i: (i, 0)),
        ),
        compiler_params=pltpu.CompilerParams(
            dimension_semantics=("parallel",),                 # megacore on v7x
            vmem_limit_bytes=32 * 1024 * 1024,                 # safe on v5e/v6e/v7x
        ),
        cost_estimate=cost,
    )(scale, shift, x_flat, gammas, w_pad, b_pad)

    xn = xn_flat.reshape(B, C, H, W)
    logits = logits_pad[:, :N]
    return xn, logits


# ---------------------------------- main -------------------------------------
if __name__ == "__main__":
    key = jax.random.PRNGKey(0)
    kx, kg, kw = jax.random.split(key, 3)

    B, C, H, W = 2, 3, 16, 16      # small stand-in for (B, 3, 224, 224)
    NUM_CLASSES = 10

    x = jax.random.uniform(kx, (B, C, H, W), dtype=jnp.float32)
    gammas = 1.0 + 0.1 * jax.random.normal(kg, (B, C), dtype=jnp.float32)

    # Deterministic synthetic head parameters (stand-in for the DenseNet body).
    w = 0.02 * jax.random.normal(kw, (C, NUM_CLASSES), dtype=jnp.float32)
    b = jnp.zeros((1, NUM_CLASSES), dtype=jnp.float32)

    mean = jnp.asarray(IMAGENET_MEAN, dtype=jnp.float32)
    std = jnp.asarray(IMAGENET_STD, dtype=jnp.float32)

    xn, logits = gamma_wrap_for_densenet_forward(x, gammas, w, b, mean, std)
    jax.block_until_ready((xn, logits))

    # Reference check: the wrapper's own compute (per-channel normalization).
    ref_xn = (x - mean.reshape(1, 3, 1, 1)) / std.reshape(1, 3, 1, 1)
    assert jnp.allclose(xn, ref_xn, atol=1e-5, rtol=1e-5), "normalization mismatch"

    # Reference check: the synthetic gamma-modulated head.
    ref_feat = ref_xn.mean(axis=(2, 3)) * gammas
    ref_logits = ref_feat @ w + b
    assert jnp.allclose(logits, ref_logits, atol=1e-5, rtol=1e-5), "head mismatch"

    print("KERNEL_OK")
</pallas_src>

<mosaic_0001>
module attributes {stable_mosaic.version = 11 : i64} {
  func.func @_fused_kernel(%arg0: i32, %arg1: memref<3xf32, #tpu.memory_space<smem>>, %arg2: memref<3xf32, #tpu.memory_space<smem>>, %arg3: memref<2x768xf32, #tpu.memory_space<vmem>>, %arg4: memref<2x3xf32, #tpu.memory_space<vmem>>, %arg5: memref<3x128xf32, #tpu.memory_space<vmem>>, %arg6: memref<1x128xf32, #tpu.memory_space<vmem>>, %arg7: memref<2x768xf32, #tpu.memory_space<vmem>>, %arg8: memref<2x128xf32, #tpu.memory_space<vmem>>) attributes {dimension_semantics = [#tpu.dimension_semantics<parallel>], iteration_bounds = array<i64: 1>, scalar_prefetch = 0 : i64, scratch_operands = 0 : i64, tpu.core_type = #tpu.core_type<tc>, window_params = [{transform_indices = @transform_0, window_bounds = array<i64: 3>}, {transform_indices = @transform_1, window_bounds = array<i64: 3>}, {transform_indices = @transform_2, window_bounds = array<i64: 2, 768>}, {transform_indices = @transform_3, window_bounds = array<i64: 2, 3>}, {pipeline_mode = #tpu.pipeline_mode<synchronous>, transform_indices = @transform_4, window_bounds = array<i64: 3, 128>}, {pipeline_mode = #tpu.pipeline_mode<synchronous>, transform_indices = @transform_5, window_bounds = array<i64: 1, 128>}, {transform_indices = @transform_6, window_bounds = array<i64: 2, 768>}, {transform_indices = @transform_7, window_bounds = array<i64: 2, 128>}]} {
    %c0 = arith.constant 0 : index
    %c0_0 = arith.constant 0 : index
    %0 = vector.load %arg6[%c0, %c0_0] : memref<1x128xf32, #tpu.memory_space<vmem>>, vector<1x128xf32>
    %c0_1 = arith.constant 0 : index
    %1 = memref.load %arg1[%c0_1] : memref<3xf32, #tpu.memory_space<smem>>
    %c0_2 = arith.constant 0 : index
    %2 = memref.load %arg2[%c0_2] : memref<3xf32, #tpu.memory_space<smem>>
    %c0_3 = arith.constant 0 : index
    %c0_4 = arith.constant 0 : index
    %3 = vector.load %arg3[%c0_3, %c0_4] : memref<2x768xf32, #tpu.memory_space<vmem>>, vector<2x256xf32>
    %4 = vector.broadcast %1 : f32 to vector<2x256xf32>
    %5 = arith.mulf %3, %4 : vector<2x256xf32>
    %6 = vector.broadcast %2 : f32 to vector<2x256xf32>
    %7 = arith.addf %5, %6 : vector<2x256xf32>
    %c0_5 = arith.constant 0 : index
    %c0_6 = arith.constant 0 : index
    %8 = vector.load %arg7[%c0_5, %c0_6] : memref<2x768xf32, #tpu.memory_space<vmem>>, vector<2x256xf32>
    tpu.vector_store %arg7[%c0_5, %c0_6], %7 {strides = array<i32>} : memref<2x768xf32, #tpu.memory_space<vmem>>, vector<2x256xf32>,
    %cst = arith.constant dense<0.000000e+00> : vector<2xf32>
    %9 = vector.multi_reduction <add>, %7, %cst [1] : vector<2x256xf32> to vector<2xf32>
    %10 = vector.shape_cast %9 : vector<2xf32> to vector<2x1xf32>
    %cst_7 = arith.constant 3.906250e-03 : f32
    %11 = vector.broadcast %cst_7 : f32 to vector<2x1xf32>
    %12 = arith.mulf %10, %11 : vector<2x1xf32>
    %c0_8 = arith.constant 0 : index
    %c0_9 = arith.constant 0 : index
    %13 = vector.load %arg4[%c0_8, %c0_9] : memref<2x3xf32, #tpu.memory_space<vmem>>, vector<2x1xf32>
    %14 = arith.mulf %12, %13 : vector<2x1xf32>
    %c0_10 = arith.constant 0 : index
    %c0_11 = arith.constant 0 : index
    %15 = vector.load %arg5[%c0_10, %c0_11] : memref<3x128xf32, #tpu.memory_space<vmem>>, vector<1x128xf32>
    %16 = vector.broadcast %14 : vector<2x1xf32> to vector<2x128xf32>
    %17 = vector.broadcast %15 : vector<1x128xf32> to vector<2x128xf32>
    %18 = arith.mulf %16, %17 : vector<2x128xf32>
    %19 = vector.broadcast %0 : vector<1x128xf32> to vector<2x128xf32>
    %20 = arith.addf %19, %18 : vector<2x128xf32>
    %c1 = arith.constant 1 : index
    %21 = memref.load %arg1[%c1] : memref<3xf32, #tpu.memory_space<smem>>
    %c1_12 = arith.constant 1 : index
    %22 = memref.load %arg2[%c1_12] : memref<3xf32, #tpu.memory_space<smem>>
    %c0_13 = arith.constant 0 : index
    %c256 = arith.constant 256 : index
    %23 = vector.load %arg3[%c0_13, %c256] : memref<2x768xf32, #tpu.memory_space<vmem>>, vector<2x256xf32>
    %24 = vector.broadcast %21 : f32 to vector<2x256xf32>
    %25 = arith.mulf %23, %24 : vector<2x256xf32>
    %26 = vector.broadcast %22 : f32 to vector<2x256xf32>
    %27 = arith.addf %25, %26 : vector<2x256xf32>
    %c0_14 = arith.constant 0 : index
    %c256_15 = arith.constant 256 : index
    %28 = vector.load %arg7[%c0_14, %c256_15] : memref<2x768xf32, #tpu.memory_space<vmem>>, vector<2x256xf32>
    tpu.vector_store %arg7[%c0_14, %c256_15], %27 {strides = array<i32>} : memref<2x768xf32, #tpu.memory_space<vmem>>, vector<2x256xf32>,
    %cst_16 = arith.constant dense<0.000000e+00> : vector<2xf32>
    %29 = vector.multi_reduction <add>, %27, %cst_16 [1] : vector<2x256xf32> to vector<2xf32>
    %30 = vector.shape_cast %29 : vector<2xf32> to vector<2x1xf32>
    %cst_17 = arith.constant 3.906250e-03 : f32
    %31 = vector.broadcast %cst_17 : f32 to vector<2x1xf32>
    %32 = arith.mulf %30, %31 : vector<2x1xf32>
    %c0_18 = arith.constant 0 : index
    %c1_19 = arith.constant 1 : index
    %33 = vector.load %arg4[%c0_18, %c1_19] : memref<2x3xf32, #tpu.memory_space<vmem>>, vector<2x1xf32>
    %34 = arith.mulf %32, %33 : vector<2x1xf32>
    %c1_20 = arith.constant 1 : index
    %c0_21 = arith.constant 0 : index
    %35 = vector.load %arg5[%c1_20, %c0_21] : memref<3x128xf32, #tpu.memory_space<vmem>>, vector<1x128xf32>
    %36 = vector.broadcast %34 : vector<2x1xf32> to vector<2x128xf32>
    %37 = vector.broadcast %35 : vector<1x128xf32> to vector<2x128xf32>
    %38 = arith.mulf %36, %37 : vector<2x128xf32>
    %39 = arith.addf %20, %38 : vector<2x128xf32>
    %c2 = arith.constant 2 : index
    %40 = memref.load %arg1[%c2] : memref<3xf32, #tpu.memory_space<smem>>
    %c2_22 = arith.constant 2 : index
    %41 = memref.load %arg2[%c2_22] : memref<3xf32, #tpu.memory_space<smem>>
    %c0_23 = arith.constant 0 : index
    %c512 = arith.constant 512 : index
    %42 = vector.load %arg3[%c0_23, %c512] : memref<2x768xf32, #tpu.memory_space<vmem>>, vector<2x256xf32>
    %43 = vector.broadcast %40 : f32 to vector<2x256xf32>
    %44 = arith.mulf %42, %43 : vector<2x256xf32>
    %45 = vector.broadcast %41 : f32 to vector<2x256xf32>
    %46 = arith.addf %44, %45 : vector<2x256xf32>
    %c0_24 = arith.constant 0 : index
    %c512_25 = arith.constant 512 : index
    %47 = vector.load %arg7[%c0_24, %c512_25] : memref<2x768xf32, #tpu.memory_space<vmem>>, vector<2x256xf32>
    tpu.vector_store %arg7[%c0_24, %c512_25], %46 {strides = array<i32>} : memref<2x768xf32, #tpu.memory_space<vmem>>, vector<2x256xf32>,
    %cst_26 = arith.constant dense<0.000000e+00> : vector<2xf32>
    %48 = vector.multi_reduction <add>, %46, %cst_26 [1] : vector<2x256xf32> to vector<2xf32>
    %49 = vector.shape_cast %48 : vector<2xf32> to vector<2x1xf32>
    %cst_27 = arith.constant 3.906250e-03 : f32
    %50 = vector.broadcast %cst_27 : f32 to vector<2x1xf32>
    %51 = arith.mulf %49, %50 : vector<2x1xf32>
    %c0_28 = arith.constant 0 : index
    %c2_29 = arith.constant 2 : index
    %52 = vector.load %arg4[%c0_28, %c2_29] : memref<2x3xf32, #tpu.memory_space<vmem>>, vector<2x1xf32>
    %53 = arith.mulf %51, %52 : vector<2x1xf32>
    %c2_30 = arith.constant 2 : index
    %c0_31 = arith.constant 0 : index
    %54 = vector.load %arg5[%c2_30, %c0_31] : memref<3x128xf32, #tpu.memory_space<vmem>>, vector<1x128xf32>
    %55 = vector.broadcast %53 : vector<2x1xf32> to vector<2x128xf32>
    %56 = vector.broadcast %54 : vector<1x128xf32> to vector<2x128xf32>
    %57 = arith.mulf %55, %56 : vector<2x128xf32>
    %58 = arith.addf %39, %57 : vector<2x128xf32>
    %c0_32 = arith.constant 0 : index
    %c0_33 = arith.constant 0 : index
    %59 = vector.load %arg8[%c0_32, %c0_33] : memref<2x128xf32, #tpu.memory_space<vmem>>, vector<2x128xf32>
    tpu.vector_store %arg8[%c0_32, %c0_33], %58 {strides = array<i32>} : memref<2x128xf32, #tpu.memory_space<vmem>>, vector<2x128xf32>,
    return
  }
  func.func @transform_0(%arg0: i32) -> i32 {
    %c0_i32 = arith.constant 0 : i32
    %c0_i32_0 = arith.constant 0 : i32
    return %c0_i32 : i32
  }
  func.func @transform_1(%arg0: i32) -> i32 {
    %c0_i32 = arith.constant 0 : i32
    %c0_i32_0 = arith.constant 0 : i32
    return %c0_i32 : i32
  }
  func.func @transform_2(%arg0: i32) -> (i32, i32) {
    %c0_i32 = arith.constant 0 : i32
    %c0_i32_0 = arith.constant 0 : i32
    return %arg0, %c0_i32 : i32, i32
  }
  func.func @transform_3(%arg0: i32) -> (i32, i32) {
    %c0_i32 = arith.constant 0 : i32
    %c0_i32_0 = arith.constant 0 : i32
    return %arg0, %c0_i32 : i32, i32
  }
  func.func @transform_4(%arg0: i32) -> (i32, i32) {
    %c0_i32 = arith.constant 0 : i32
    %c0_i32_0 = arith.constant 0 : i32
    %c0_i32_1 = arith.constant 0 : i32
    return %c0_i32, %c0_i32_0 : i32, i32
  }
  func.func @transform_5(%arg0: i32) -> (i32, i32) {
    %c0_i32 = arith.constant 0 : i32
    %c0_i32_0 = arith.constant 0 : i32
    %c0_i32_1 = arith.constant 0 : i32
    return %c0_i32, %c0_i32_0 : i32, i32
  }
  func.func @transform_6(%arg0: i32) -> (i32, i32) {
    %c0_i32 = arith.constant 0 : i32
    %c0_i32_0 = arith.constant 0 : i32
    return %arg0, %c0_i32 : i32, i32
  }
  func.func @transform_7(%arg0: i32) -> (i32, i32) {
    %c0_i32 = arith.constant 0 : i32
    %c0_i32_0 = arith.constant 0 : i32
    return %arg0, %c0_i32 : i32, i32
  }
}

</mosaic_0001>

<llo_original>
// kernel: tpu_custom_call.1
$region0: #{tpu_custom_call.1}
  #allocation0 [shape = 'u32[]', space=smem, size = 0x4, offset = 0x4, fixed_abs, tag = 'smem constant byte address 0x4 - core index']
  #allocation1 [shape = 'u32[144,128]{1,0:T(1,128)}', space=vmem, size = 0x12000, scoped, tag = 'internal scratch']
  %s0 = inlined_call_operand.hbm [shape: f32[3], index: 0, kind: input, shape index: {}]
  %s1 = inlined_call_operand.vmem [shape: f32[3], index: 1, kind: input, shape index: {}]
  %s2 = inlined_call_operand.hbm [shape: f32[2,768], index: 2, kind: input, shape index: {}]
  %s3 = inlined_call_operand.vmem [shape: f32[2,3], index: 3, kind: input, shape index: {}]
  %s4 = inlined_call_operand.vmem [shape: f32[3,128], index: 4, kind: input, shape index: {}]
  %s5 = inlined_call_operand.vmem [shape: f32[1,128], index: 5, kind: input, shape index: {}]
  %s6 = inlined_call_operand.hbm [shape: f32[2,768], index: 6, kind: output, shape index: {0}]
  %s7 = inlined_call_operand.hbm [shape: f32[2,128], index: 7, kind: output, shape index: {1}]
  %8 = xla_tuple %s6, %s7
  %s9 = sld [smem:[#allocation0]]
  $region54: #{tpu_custom_call.1} parent=0
    _
  %s11 = ssub.s32 1, %s9
  %s12 = scalar_select 0, %s11, %s9
  $region1: #{tpu_custom_call.1} parent=0
    #allocation2 [shape = 'u8[512]{0}', space=smem, size = 0x200, scoped, tag = 'input window, operand 0, single buffered']
    #allocation3 [shape = 's32[1]{0}', space=sflag, size = 0x4, scoped, tag = 'scoped memory for tpu_custom_call.1']
    #allocation4 [shape = 's32[1]{0}', space=sflag, size = 0x4, scoped, tag = 'scoped memory for tpu_custom_call.1']
    #allocation5 [shape = 's32[1]{0}', space=sflag, size = 0x4, scoped, tag = 'scoped memory for tpu_custom_call.1']
    #allocation6 [shape = 's32[1]{0}', space=sflag, size = 0x4, scoped, tag = 'scoped memory for tpu_custom_call.1']
    #allocation7 [shape = 'u8[512]{0}', space=smem, size = 0x200, scoped, tag = 'input window, operand 1, single buffered']
    #allocation8 [shape = 'u8[6144]{0}', space=vmem, size = 0x1800, scoped, tag = 'input window, operand 2, single buffered']
    #allocation9 [shape = 'u8[6144]{0}', space=vmem, size = 0x1800, scoped, tag = 'output window, operand 0, single buffered']
    #allocation10 [shape = 'u8[1024]{0}', space=vmem, size = 0x400, scoped, tag = 'output window, operand 1, single buffered']
    #allocation11 [shape = 's32[1]{0}', space=sflag, size = 0x4, scoped, tag = 'scoped memory for tpu_custom_call.1']
    %13 = vsyncpa [#allocation5], 0
    %14 = vsyncpa [#allocation6], 0
    %15 = vsyncpa [#allocation3], 0
    %16 = vsyncpa [#allocation4], 0
    %17 = vsyncpa [#allocation11], 0
    // Predicated region
    $region2: #{tpu_custom_call.1} parent=1 // pred_check
      _
    $region3: #{tpu_custom_call.1} parent=1 // pred_check_branch
      %19 = sbr.rel (0) target = $region5
    $region4: #{tpu_custom_call.1} parent=1 // pred_region
      %s21 = ssub.s32 16, 16
      %22 = vsyncadd [#allocation5], %s21
      %25 = dma.hbm_to_smem %s0, 16, [#allocation2], [#allocation5]
    $region5: #{tpu_custom_call.1} parent=1 // pred_fallthru
      _
    // Predicated region
    $region6: #{tpu_custom_call.1} parent=1 // pred_check
      _
    $region7: #{tpu_custom_call.1} parent=1 // pred_check_branch
      %27 = sbr.rel (0) target = $region9
    $region8: #{tpu_custom_call.1} parent=1 // pred_region
      %s29 = ssub.s32 16, 16
      %30 = vsyncadd [#allocation6], %s29
      %s32 = sshll.u32 %s1, 4
      %s33 = int_to_ptr.vmem [resolvable:$true] %s32
      %35 = dma.vmem_to_smem %s33, 16, [#allocation7], [#allocation6]
    $region9: #{tpu_custom_call.1} parent=1 // pred_fallthru
      _
    // Predicated region
    $region10: #{tpu_custom_call.1} parent=1 // pred_check
      _
    $region11: #{tpu_custom_call.1} parent=1 // pred_check_branch
      %37 = sbr.rel (0) target = $region13
    $region12: #{tpu_custom_call.1} parent=1 // pred_region
      %s39 = ssub.s32 192, 192
      %40 = vsyncadd [#allocation3], %s39
      %s42 = sshll.u32 [#allocation8], 4
      %s43 = int_to_ptr.vmem [resolvable:$true] %s42
      %45 = dma.hbm_to_vmem [thread:$0]  %s2, 192, %s43, [#allocation3]
    $region13: #{tpu_custom_call.1} parent=1 // pred_fallthru
      _
    // Predicated region
    $region14: #{tpu_custom_call.1} parent=1 // pred_check
      _
    $region15: #{tpu_custom_call.1} parent=1 // pred_check_branch
      %47 = sbr.rel (0) target = $region17
    $region16: #{tpu_custom_call.1} parent=1 // pred_region
      _
    $region17: #{tpu_custom_call.1} parent=1 // pred_fallthru
      _
    // Predicated region
    $region18: #{tpu_custom_call.1} parent=1 // pred_check
      _
    $region19: #{tpu_custom_call.1} parent=1 // pred_check_branch
      %49 = sbr.rel (0) target = $region21
    $region20: #{tpu_custom_call.1} parent=1 // pred_region
      _
    $region21: #{tpu_custom_call.1} parent=1 // pred_fallthru
      _
    // Predicated region
    $region22: #{tpu_custom_call.1} parent=1 // pred_check
      _
    $region23: #{tpu_custom_call.1} parent=1 // pred_check_branch
      %51 = sbr.rel (0) target = $region25
    $region24: #{tpu_custom_call.1} parent=1 // pred_region
      _
    $region25: #{tpu_custom_call.1} parent=1 // pred_fallthru
      _
    // Predicated region
    $region26: #{tpu_custom_call.1} parent=1 // pred_check
      _
    $region27: #{tpu_custom_call.1} parent=1 // pred_check_branch
      %53 = sbr.rel (0) target = $region29
    $region28: #{tpu_custom_call.1} parent=1 // pred_region
      %54 = dma.done [#allocation5], 16
    $region29: #{tpu_custom_call.1} parent=1 // pred_fallthru
      _
    // Predicated region
    $region30: #{tpu_custom_call.1} parent=1 // pred_check
      _
    $region31: #{tpu_custom_call.1} parent=1 // pred_check_branch
      %56 = sbr.rel (0) target = $region33
    $region32: #{tpu_custom_call.1} parent=1 // pred_region
      %57 = dma.done [#allocation6], 16
    $region33: #{tpu_custom_call.1} parent=1 // pred_fallthru
      _
    // Predicated region
    $region34: #{tpu_custom_call.1} parent=1 // pred_check
      _
    $region35: #{tpu_custom_call.1} parent=1 // pred_check_branch
      %59 = sbr.rel (0) target = $region37
    $region36: #{tpu_custom_call.1} parent=1 // pred_region
      %60 = dma.done [#allocation3], 192
    $region37: #{tpu_custom_call.1} parent=1 // pred_fallthru
      _
    %61 = sfence
    %v62 = vld [vmem:[%s5] sm:$0x1]
    %s63 = sld [smem:[#allocation2]]
    %s64 = sld [smem:[#allocation7]]
    %v65 = vld [vmem:[#allocation8] sm:$0xf]
    %v66 = vstv %s63
    %v67 = vmul.f32 %v65, %v66
    %v68 = vstv %s64
    %v69 = vadd.f32 %v67, %v68
    %70 = vst [vmem:[#allocation9] sm:$0xf] %v69
    %v73 = vunpack.c.l.s4 1983009808
    %v74 = vunpack.c.0.s8 %v73
    %v75 = vlaneseq
    %v76 = vshrl.u32 %v75, 7
    %v77 = vsub.s32 %v74, %v76
    %v78 = vrot.slane %v69, %v77
    %v79 = vcombine.high %v78, %v78
    %vm82 = vcmask 1041408
    %v83 = vsel %vm82, %v78, 0.0
    %v84 = vsel %vm82, %v79, 0.0
    %v85 = vadd.f32 %v83, %v84
    %86 = vadd.xlane.f32.xlu0 %v85
    %v87 = vpop.xlane.xlu0 %86
    %v88 = vmul.f32 %v87, 0.00390625
    %v89 = vld [vmem:[%s3] sm:$0x3]
    %v90 = vmul.f32 %v88, %v89
    %v91 = vld [vmem:[%s4] sm:$0x1]
    %93 = vset.pattern.permute.xlu0 0
    %94 = vperm.xlu0 %93, %v90
    %v95 = vpop.permute.xlu0 %94
    %v97 = vlaneseq
    %v98 = vshrl.u32 %v97, 7
    %v99 = vsub.s32 0, %v98
    %v100 = vrot.slane %v91, %v99
    %v101 = vmul.f32 %v95, %v100
    %v103 = vlaneseq
    %v104 = vshrl.u32 %v103, 7
    %v105 = vsub.s32 0, %v104
    %v106 = vrot.slane %v62, %v105
    %v108 = vadd.f32 %v106, %v101
    %s109 = sld [smem:[#allocation2 + $0x1]]
    %s110 = sld [smem:[#allocation7 + $0x1]]
    %v111 = vld [vmem:[#allocation8 + $0x4] sm:$0xf]
    %v112 = vstv %s109
    %v113 = vmul.f32 %v111, %v112
    %v114 = vstv %s110
    %v115 = vadd.f32 %v113, %v114
    %116 = vst [vmem:[#allocation9 + $0x4] sm:$0xf] %v115
    %v119 = vunpack.c.l.s4 1983009808
    %v120 = vunpack.c.0.s8 %v119
    %v121 = vlaneseq
    %v122 = vshrl.u32 %v121, 7
    %v123 = vsub.s32 %v120, %v122
    %v124 = vrot.slane %v115, %v123
    %v125 = vcombine.high %v124, %v124
    %v128 = vsel %vm82, %v124, 0.0
    %v129 = vsel %vm82, %v125, 0.0
    %v130 = vadd.f32 %v128, %v129
    %131 = vadd.xlane.f32.xlu0 %v130
    %v132 = vpop.xlane.xlu0 %131
    %v133 = vmul.f32 %v132, 0.00390625
    %v134 = vld [vmem:[%s3] sm:$0x3]
    %v135 = vmul.f32 %v133, %v134
    %v136 = vld [vmem:[%s4 + $0x1] sm:$0x1]
    %138 = vset.pattern.permute.xlu0 1
    %139 = vperm.xlu0 %138, %v135
    %v140 = vpop.permute.xlu0 %139
    %v142 = vlaneseq
    %v143 = vshrl.u32 %v142, 7
    %v144 = vsub.s32 0, %v143
    %v145 = vrot.slane %v136, %v144
    %v146 = vmul.f32 %v140, %v145
    %v147 = vadd.f32 %v108, %v146
    %s148 = sld [smem:[#allocation2 + $0x2]]
    %s149 = sld [smem:[#allocation7 + $0x2]]
    %v150 = vld [vmem:[#allocation8 + $0x8] sm:$0xf]
    %v151 = vstv %s148
    %v152 = vmul.f32 %v150, %v151
    %v153 = vstv %s149
    %v154 = vadd.f32 %v152, %v153
    %155 = vst [vmem:[#allocation9 + $0x8] sm:$0xf] %v154
    %v158 = vunpack.c.l.s4 1983009808
    %v159 = vunpack.c.0.s8 %v158
    %v160 = vlaneseq
    %v161 = vshrl.u32 %v160, 7
    %v162 = vsub.s32 %v159, %v161
    %v163 = vrot.slane %v154, %v162
    %v164 = vcombine.high %v163, %v163
    %v167 = vsel %vm82, %v163, 0.0
    %v168 = vsel %vm82, %v164, 0.0
    %v169 = vadd.f32 %v167, %v168
    %170 = vadd.xlane.f32.xlu0 %v169
    %v171 = vpop.xlane.xlu0 %170
    %v172 = vmul.f32 %v171, 0.00390625
    %v173 = vld [vmem:[%s3] sm:$0x3]
    %v174 = vmul.f32 %v172, %v173
    %v175 = vld [vmem:[%s4 + $0x2] sm:$0x1]
    %177 = vset.pattern.permute.xlu0 2
    %178 = vperm.xlu0 %177, %v174
    %v179 = vpop.permute.xlu0 %178
    %v181 = vlaneseq
    %v182 = vshrl.u32 %v181, 7
    %v183 = vsub.s32 0, %v182
    %v184 = vrot.slane %v175, %v183
    %v185 = vmul.f32 %v179, %v184
    %v186 = vadd.f32 %v147, %v185
    %187 = vst [vmem:[#allocation10] sm:$0x3] %v186
    // Predicated region
    $region38: #{tpu_custom_call.1} parent=1 // pred_check
      _
    $region39: #{tpu_custom_call.1} parent=1 // pred_check_branch
      %189 = sbr.rel (0) target = $region41
    $region40: #{tpu_custom_call.1} parent=1 // pred_region
      %s191 = ssub.s32 192, 192
      %192 = vsyncadd [#allocation4], %s191
      %s194 = sshll.u32 [#allocation9], 4
      %s195 = int_to_ptr.vmem [resolvable:$true] %s194
      %197 = dma.vmem_to_hbm [thread:$0]  %s195, 192, %s6, [#allocation4]
    $region41: #{tpu_custom_call.1} parent=1 // pred_fallthru
      _
    // Predicated region
    $region42: #{tpu_custom_call.1} parent=1 // pred_check
      _
    $region43: #{tpu_custom_call.1} parent=1 // pred_check_branch
      %199 = sbr.rel (0) target = $region45
    $region44: #{tpu_custom_call.1} parent=1 // pred_region
      %s201 = ssub.s32 32, 32
      %202 = vsyncadd [#allocation11], %s201
      %s204 = sshll.u32 [#allocation10], 4
      %s205 = int_to_ptr.vmem [resolvable:$true] %s204
      %207 = dma.vmem_to_hbm [thread:$0]  %s205, 32, %s7, [#allocation11]
    $region45: #{tpu_custom_call.1} parent=1 // pred_fallthru
      _
    // Predicated region
    $region46: #{tpu_custom_call.1} parent=1 // pred_check
      _
    $region47: #{tpu_custom_call.1} parent=1 // pred_check_branch
      %209 = sbr.rel (0) target = $region49
    $region48: #{tpu_custom_call.1} parent=1 // pred_region
      %210 = dma.done [#allocation4], 192
    $region49: #{tpu_custom_call.1} parent=1 // pred_fallthru
      _
    // Predicated region
    $region50: #{tpu_custom_call.1} parent=1 // pred_check
      _
    $region51: #{tpu_custom_call.1} parent=1 // pred_check_branch
      %212 = sbr.rel (0) target = $region53
    $region52: #{tpu_custom_call.1} parent=1 // pred_region
      %213 = dma.done [#allocation11], 32
    $region53: #{tpu_custom_call.1} parent=1 // pred_fallthru
      _
    %214 = vsyncpa [#allocation3], 1
    %215 = vsyncpa [#allocation4], 1
    %216 = vsyncpa [#allocation11], 1
    %217 = vsyncpa [#allocation5], 1
    %218 = vsyncpa [#allocation6], 1

</llo_original>
